<compile_context>
chip_gen: v6e
topology: v6e:2x2x1
jax: 0.10.0
libtpu: 0.0.40
codegen_flags: <defaults>
</compile_context>

<pallas_src>
import jax
import jax.numpy as jnp
from jax.experimental import pallas as pl
from jax.experimental.pallas import tpu as pltpu

IN_FEATURES = 10
HIDDEN1 = 13
HIDDEN2 = 8
OUT_FEATURES = 2

# Packed weight-slab layout (rows are 8-aligned per weight).
W1_ROW = 0                 # rows  0:13, cols 0:10  -> W1  (out=13, in=10)  PyTorch layout
W2_ROW = 16                # rows 16:24, cols 0:13  -> W2  (out=8,  in=13)
W3_ROW = 24                # rows 24:26, cols 0:8   -> W3  (out=2,  in=8)
B3_COL = HIDDEN2           # rows 24:26, col  8     -> b3  (2,)
SLAB_ROWS = 32
SLAB_COLS = 16


def fused_mlp_kernel(x_ref, w_ref, o_ref):
    """One batch tile, feature-major: x_ref (10, TB), o_ref (2, TB)."""
    x_t = x_ref[...]                                                     # (10, TB)

    w1 = w_ref[W1_ROW:W1_ROW + HIDDEN1, 0:IN_FEATURES]                   # (13, 10)
    w2 = w_ref[W2_ROW:W2_ROW + HIDDEN2, 0:HIDDEN1]                       # (8, 13)
    w3 = w_ref[W3_ROW:W3_ROW + OUT_FEATURES, 0:HIDDEN2]                  # (2, 8)
    b3 = w_ref[W3_ROW:W3_ROW + OUT_FEATURES, B3_COL:B3_COL + 1]          # (2, 1)

    # All matmuls keep the batch on the lane axis (lane-dense intermediates).
    h1 = jnp.maximum(jnp.dot(w1, x_t, preferred_element_type=jnp.float32), 0.0)   # (13, TB)
    h2 = jax.nn.sigmoid(jnp.dot(w2, h1, preferred_element_type=jnp.float32))      # (8, TB)
    z = jnp.dot(w3, h2, preferred_element_type=jnp.float32) + b3                  # (2, TB)

    o_ref[...] = z


def pack_params(w1, w2, w3, b3):
    """Pack PyTorch-layout weights ((out,in)) + bias into one lane-aligned f32 slab."""
    slab = jnp.zeros((SLAB_ROWS, SLAB_COLS), jnp.float32)
    slab = slab.at[W1_ROW:W1_ROW + HIDDEN1, 0:IN_FEATURES].set(w1.astype(jnp.float32))
    slab = slab.at[W2_ROW:W2_ROW + HIDDEN2, 0:HIDDEN1].set(w2.astype(jnp.float32))
    slab = slab.at[W3_ROW:W3_ROW + OUT_FEATURES, 0:HIDDEN2].set(w3.astype(jnp.float32))
    slab = slab.at[W3_ROW:W3_ROW + OUT_FEATURES, B3_COL].set(b3.astype(jnp.float32))
    return slab


def mlp_forward(x, w1, w2, w3, b3, *, block_b=2048):
    """x: (B, 10) batch-major (PyTorch layout). Returns (B, 2)."""
    B = x.shape[0]
    tb = min(block_b, B)
    grid = (pl.cdiv(B, tb),)

    # Layout plumbing only: present a lane-dense (feature-major) slab to the kernel.
    x_t = x.astype(jnp.float32).T                                        # (10, B)
    slab = pack_params(w1, w2, w3, b3)

    cost = pl.CostEstimate(
        flops=2 * B * (IN_FEATURES * HIDDEN1 + HIDDEN1 * HIDDEN2 + HIDDEN2 * OUT_FEATURES),
        transcendentals=B * HIDDEN2,                                      # sigmoid exps
        bytes_accessed=4 * (B * (IN_FEATURES + OUT_FEATURES) + SLAB_ROWS * SLAB_COLS),
    )

    out_t = pl.pallas_call(
        fused_mlp_kernel,
        out_shape=jax.ShapeDtypeStruct((OUT_FEATURES, B), jnp.float32),
        grid_spec=pltpu.PrefetchScalarGridSpec(
            num_scalar_prefetch=0,
            grid=grid,
            in_specs=[
                pl.BlockSpec((IN_FEATURES, tb), lambda i: (0, i)),        # batch tile of x^T
                pl.BlockSpec((SLAB_ROWS, SLAB_COLS), lambda i: (0, 0)),   # resident weight slab
            ],
            out_specs=pl.BlockSpec((OUT_FEATURES, tb), lambda i: (0, i)),
        ),
        compiler_params=pltpu.CompilerParams(
            dimension_semantics=("parallel",),                            # megacore split on v7x
        ),
        cost_estimate=cost,
    )(x_t, slab)

    return out_t.T                                                        # back to (B, 2)


def reference_forward(x, w1, w2, w3, b3):
    """Pure-JAX reference matching the PyTorch Model (linear1/2 bias-free)."""
    h1 = jnp.maximum(x @ w1.T, 0.0)
    h2 = jax.nn.sigmoid(h1 @ w2.T)
    return h2 @ w3.T + b3


if __name__ == "__main__":
    key = jax.random.PRNGKey(0)
    k_x, k_w1, k_w2, k_w3, k_b3 = jax.random.split(key, 5)

    B = 256  # small demo batch; exercises the grid with a 128-row tile
    x = jax.random.normal(k_x, (B, IN_FEATURES), dtype=jnp.float32)

    # PyTorch nn.Linear weight layout: (out_features, in_features); bias 1-D.
    w1 = jax.random.uniform(k_w1, (HIDDEN1, IN_FEATURES), jnp.float32,
                            -1.0 / IN_FEATURES ** 0.5, 1.0 / IN_FEATURES ** 0.5)
    w2 = jax.random.uniform(k_w2, (HIDDEN2, HIDDEN1), jnp.float32,
                            -1.0 / HIDDEN1 ** 0.5, 1.0 / HIDDEN1 ** 0.5)
    w3 = jax.random.uniform(k_w3, (OUT_FEATURES, HIDDEN2), jnp.float32,
                            -1.0 / HIDDEN2 ** 0.5, 1.0 / HIDDEN2 ** 0.5)
    b3 = jax.random.uniform(k_b3, (OUT_FEATURES,), jnp.float32,
                            -1.0 / HIDDEN2 ** 0.5, 1.0 / HIDDEN2 ** 0.5)

    out = jax.block_until_ready(mlp_forward(x, w1, w2, w3, b3, block_b=128))
    ref = reference_forward(x, w1, w2, w3, b3)

    assert out.shape == (B, OUT_FEATURES)
    assert jnp.allclose(out, ref, atol=1e-5, rtol=1e-5), "mismatch vs reference"

    print("KERNEL_OK")
</pallas_src>

<mosaic_0001>
module attributes {stable_mosaic.version = 11 : i64} {
  func.func @fused_mlp_kernel(%arg0: i32, %arg1: memref<10x128xf32, #tpu.memory_space<vmem>>, %arg2: memref<32x16xf32, #tpu.memory_space<vmem>>, %arg3: memref<2x128xf32, #tpu.memory_space<vmem>>) attributes {dimension_semantics = [#tpu.dimension_semantics<parallel>], iteration_bounds = array<i64: 2>, scalar_prefetch = 0 : i64, scratch_operands = 0 : i64, tpu.core_type = #tpu.core_type<tc>, window_params = [{transform_indices = @transform_0, window_bounds = array<i64: 10, 128>}, {pipeline_mode = #tpu.pipeline_mode<synchronous>, transform_indices = @transform_1, window_bounds = array<i64: 32, 16>}, {transform_indices = @transform_2, window_bounds = array<i64: 2, 128>}]} {
    %c0 = arith.constant 0 : index
    %c0_0 = arith.constant 0 : index
    %0 = vector.load %arg1[%c0, %c0_0] : memref<10x128xf32, #tpu.memory_space<vmem>>, vector<10x128xf32>
    %c0_1 = arith.constant 0 : index
    %c0_2 = arith.constant 0 : index
    %1 = vector.load %arg2[%c0_1, %c0_2] : memref<32x16xf32, #tpu.memory_space<vmem>>, vector<13x10xf32>
    %c16 = arith.constant 16 : index
    %c0_3 = arith.constant 0 : index
    %2 = vector.load %arg2[%c16, %c0_3] : memref<32x16xf32, #tpu.memory_space<vmem>>, vector<8x13xf32>
    %c24 = arith.constant 24 : index
    %c0_4 = arith.constant 0 : index
    %3 = vector.load %arg2[%c24, %c0_4] : memref<32x16xf32, #tpu.memory_space<vmem>>, vector<2x8xf32>
    %c24_5 = arith.constant 24 : index
    %c8 = arith.constant 8 : index
    %4 = vector.load %arg2[%c24_5, %c8] : memref<32x16xf32, #tpu.memory_space<vmem>>, vector<2x1xf32>
    %cst = arith.constant dense<0.000000e+00> : vector<13x128xf32>
    %5 = tpu.matmul %1, %0, %cst {dimension_numbers = #tpu.dot_dimension_numbers<[1], [0], [0], [1], [0, 0, 1, 1], [], []>} : vector<13x10xf32>, vector<10x128xf32>, vector<13x128xf32> -> vector<13x128xf32>
    %cst_6 = arith.constant 0.000000e+00 : f32
    %6 = vector.broadcast %cst_6 : f32 to vector<13x128xf32>
    %7 = arith.maximumf %5, %6 : vector<13x128xf32>
    %cst_7 = arith.constant dense<0.000000e+00> : vector<8x128xf32>
    %8 = tpu.matmul %2, %7, %cst_7 {dimension_numbers = #tpu.dot_dimension_numbers<[1], [0], [0], [1], [0, 0, 1, 1], [], []>} : vector<8x13xf32>, vector<13x128xf32>, vector<8x128xf32> -> vector<8x128xf32>
    %9 = arith.negf %8 : vector<8x128xf32>
    %10 = math.exp %9 : vector<8x128xf32>
    %cst_8 = arith.constant 1.000000e+00 : f32
    %11 = vector.broadcast %cst_8 : f32 to vector<8x128xf32>
    %12 = arith.addf %11, %10 : vector<8x128xf32>
    %13 = arith.divf %11, %12 : vector<8x128xf32>
    %cst_9 = arith.constant dense<0.000000e+00> : vector<2x128xf32>
    %14 = tpu.matmul %3, %13, %cst_9 {dimension_numbers = #tpu.dot_dimension_numbers<[1], [0], [0], [1], [0, 0, 1, 1], [], []>} : vector<2x8xf32>, vector<8x128xf32>, vector<2x128xf32> -> vector<2x128xf32>
    %15 = vector.broadcast %4 : vector<2x1xf32> to vector<2x128xf32>
    %16 = arith.addf %14, %15 : vector<2x128xf32>
    %c0_10 = arith.constant 0 : index
    %c0_11 = arith.constant 0 : index
    %17 = vector.load %arg3[%c0_10, %c0_11] : memref<2x128xf32, #tpu.memory_space<vmem>>, vector<2x128xf32>
    tpu.vector_store %arg3[%c0_10, %c0_11], %16 {strides = array<i32>} : memref<2x128xf32, #tpu.memory_space<vmem>>, vector<2x128xf32>,
    return
  }
  func.func @transform_0(%arg0: i32) -> (i32, i32) {
    %c0_i32 = arith.constant 0 : i32
    %c0_i32_0 = arith.constant 0 : i32
    return %c0_i32, %arg0 : i32, i32
  }
  func.func @transform_1(%arg0: i32) -> (i32, i32) {
    %c0_i32 = arith.constant 0 : i32
    %c0_i32_0 = arith.constant 0 : i32
    %c0_i32_1 = arith.constant 0 : i32
    return %c0_i32, %c0_i32_0 : i32, i32
  }
  func.func @transform_2(%arg0: i32) -> (i32, i32) {
    %c0_i32 = arith.constant 0 : i32
    %c0_i32_0 = arith.constant 0 : i32
    return %c0_i32, %arg0 : i32, i32
  }
}

</mosaic_0001>

<llo_original>
// kernel: tpu_custom_call.1
$region0: #{tpu_custom_call.1}
  #allocation0 [shape = 'u32[]', space=smem, size = 0x4, offset = 0x4, fixed_abs, tag = 'smem constant byte address 0x4 - core index']
  #allocation1 [shape = 'u32[144,128]{1,0:T(1,128)}', space=vmem, size = 0x12000, scoped, tag = 'internal scratch']
  %s0 = inlined_call_operand.vmem [shape: f32[10,256], index: 0, kind: input, shape index: {}]
  %s1 = inlined_call_operand.vmem [shape: f32[32,16], index: 1, kind: input, shape index: {}]
  %s2 = inlined_call_operand.hbm [shape: f32[2,256], index: 2, kind: output, shape index: {}]
  %s3 = sld [smem:[#allocation0]]
  $region79: #{tpu_custom_call.1} parent=0
    _
  %s5 = ssub.s32 1, %s3
  %s6 = scalar_select 0, %s5, %s3
  $region1: #{tpu_custom_call.1} parent=0
    #allocation2 [shape = 'u8[16384]{0}', space=vmem, size = 0x4000, scoped, tag = 'input window, operand 0']
    #allocation3 [shape = 'u8[2048]{0}', space=vmem, size = 0x800, scoped, tag = 'output window, operand 0']
    #allocation4 [shape = 's32[2]{0}', space=sflag, size = 0x8, scoped, tag = 'scoped memory for tpu_custom_call.1']
    %7 = vsyncpa [#allocation4], 0
    %s8 = scalar_lea.sflag [#allocation4], 1
    %9 = vsyncpa %s8, 0
    loop: start=0, step=1, limit=4
    $region2: #{tpu_custom_call.1} parent=1 // loop_pre_header
      _
    $region3: #{tpu_custom_call.1} parent=1 // loop_header
      %s11 = sphi 0, %s15
      %p12 = scmp.ge.s32.totalorder %s11, 4
      %s21 = sphi 0, %s23
      %s24 = sphi 0, %s21
      %s25 = sphi 0, %s24
      %s41 = sphi 0, %s25
      %s45 = sphi 0, %s45
      %s47 = sphi 0, %s45
      %s48 = sphi 0, %s47
      %s62 = sphi 0, %s48
      %s68 = sphi 0, %s70
      %s71 = sphi 0, %s68
      %s72 = sphi 0, %s71
      %s88 = sphi 0, %s72
    $region4: #{tpu_custom_call.1} parent=1 // loop_header_branch
      %14 = sbr.rel (%p12) target = $region8
    $region5: #{tpu_custom_call.1} parent=1 // loop_body
      %s16 = ssub.s32 %s11, 1
      %s17 = ssub.s32 %s11, 2
      %s18 = sadd.s32 %s11, 1
      %s19 = ssub.s32 %s11, %s18
      %p20 = scmp.eq.s32.totalorder %s19, 0
      %s22 = sadd.s32 %s21, 1
      %s23 = scalar_select %p20, %s21, %s22
      %p26 = pneg %p20
      %p27 = scmp.eq.s32.totalorder %s11, 1
      %p28 = por %p26, %p27
      %p29 = scmp.ne.s32.totalorder %s21, %s24
      %p30 = scmp.eq.s32.totalorder %s11, 0
      %p31 = por %p29, %p30
      %p32 = scmp.ne.s32.totalorder %s21, %s24
      %p33 = scmp.eq.s32.totalorder %s16, 1
      %p34 = por %p32, %p33
      %p35 = scmp.ne.s32.totalorder %s24, %s25
      %p36 = scmp.eq.s32.totalorder %s16, 0
      %p37 = por %p35, %p36
      %p38 = scmp.ne.s32.totalorder %s24, %s25
      %p39 = scmp.eq.s32.totalorder %s17, 1
      %p40 = por %p38, %p39
      %p42 = scmp.ne.s32.totalorder %s25, %s41
      %p43 = scmp.eq.s32.totalorder %s17, 0
      %p44 = por %p42, %p43
      %s46 = sadd.s32 %s45, 1
      %p49 = scmp.eq.s32.totalorder %s11, 1
      %p50 = scmp.ne.s32.totalorder %s45, %s47
      %p51 = scmp.eq.s32.totalorder %s11, 0
      %p52 = por %p50, %p51
      %p53 = scmp.ne.s32.totalorder %s45, %s47
      %p54 = scmp.eq.s32.totalorder %s16, 1
      %p55 = por %p53, %p54
      %p56 = scmp.ne.s32.totalorder %s47, %s48
      %p57 = scmp.eq.s32.totalorder %s16, 0
      %p58 = por %p56, %p57
      %p59 = scmp.ne.s32.totalorder %s47, %s48
      %p60 = scmp.eq.s32.totalorder %s17, 1
      %p61 = por %p59, %p60
      %p63 = scmp.ne.s32.totalorder %s48, %s62
      %p64 = scmp.eq.s32.totalorder %s17, 0
      %p65 = por %p63, %p64
      %s66 = ssub.s32 %s11, %s18
      %p67 = scmp.eq.s32.totalorder %s66, 0
      %s69 = sadd.s32 %s68, 1
      %s70 = scalar_select %p67, %s68, %s69
      %p73 = pneg %p67
      %p74 = scmp.eq.s32.totalorder %s11, 1
      %p75 = por %p73, %p74
      %p76 = scmp.ne.s32.totalorder %s68, %s71
      %p77 = scmp.eq.s32.totalorder %s11, 0
      %p78 = por %p76, %p77
      %p79 = scmp.ne.s32.totalorder %s68, %s71
      %p80 = scmp.eq.s32.totalorder %s16, 1
      %p81 = por %p79, %p80
      %p82 = scmp.ne.s32.totalorder %s71, %s72
      %p83 = scmp.eq.s32.totalorder %s16, 0
      %p84 = por %p82, %p83
      %p85 = scmp.ne.s32.totalorder %s71, %s72
      %p86 = scmp.eq.s32.totalorder %s17, 1
      %p87 = por %p85, %p86
      %p89 = scmp.ne.s32.totalorder %s72, %s88
      %p90 = scmp.eq.s32.totalorder %s17, 0
      %p91 = por %p89, %p90
      %p92 = scmp.le.s32.totalorder 1, %s11
      %p93 = scmp.lt.s32.totalorder %s11, 3
      %p94 = pnand %p92, %p93
      %p95 = pneg %p94
      // Predicated region
      $region9: #{tpu_custom_call.1} parent=5 // pred_check
        _
      $region10: #{tpu_custom_call.1} parent=5 // pred_check_branch
        %97 = sbr.rel (%p94) target = $region12
      $region11: #{tpu_custom_call.1} parent=5 // pred_region
        %s98 = ssub.s32 %s11, 1
        // Predicated region
        $region13: #{tpu_custom_call.1} parent=11 // pred_check
          %p99 = pneg %p58
        $region14: #{tpu_custom_call.1} parent=11 // pred_check_branch
          %101 = sbr.rel (%p99) target = $region16
        $region15: #{tpu_custom_call.1} parent=11 // pred_region
          _
        $region16: #{tpu_custom_call.1} parent=11 // pred_fallthru
          _
      $region12: #{tpu_custom_call.1} parent=5 // pred_fallthru
        _
      %p102 = scmp.lt.s32.totalorder %s11, 2
      // Predicated region
      $region17: #{tpu_custom_call.1} parent=5 // pred_check
        %p103 = pneg %p102
      $region18: #{tpu_custom_call.1} parent=5 // pred_check_branch
        %105 = sbr.rel (%p103) target = $region20
      $region19: #{tpu_custom_call.1} parent=5 // pred_region
        // Predicated region
        $region21: #{tpu_custom_call.1} parent=19 // pred_check
          %p106 = pneg %p31
        $region22: #{tpu_custom_call.1} parent=19 // pred_check_branch
          %108 = sbr.rel (%p106) target = $region24
        $region23: #{tpu_custom_call.1} parent=19 // pred_region
          %s109 = sand.u32 %s21, 1
          %s110 = sand.u32 %s21, 1
          %s111 = smul.addr %s110, 16
          %s112 = scalar_lea.vmem [#allocation2], %s111
          %s113 = smul.addr %s11, 8
          %s114 = scalar_lea.vmem %s0, %s113
          // Predicated region
          $region25: #{tpu_custom_call.1} parent=23 // pred_check
            _
          $region26: #{tpu_custom_call.1} parent=23 // pred_check_branch
            %116 = sbr.rel (0) target = $region28
          $region27: #{tpu_custom_call.1} parent=23 // pred_region
            // Predicated region
            $region29: #{tpu_custom_call.1} parent=27 // pred_check
              _
            $region30: #{tpu_custom_call.1} parent=27 // pred_check_branch
              %118 = sbr.rel (0) target = $region32
            $region31: #{tpu_custom_call.1} parent=27 // pred_region
              // Predicated region
              $region44: #{tpu_custom_call.1} parent=31 // pred_check
                _
              $region45: #{tpu_custom_call.1} parent=31 // pred_check_branch
                %136 = sbr.rel (0) target = $region47
              $region46: #{tpu_custom_call.1} parent=31 // pred_region
                loop: start=0, step=1, limit=1
                $region48: #{tpu_custom_call.1} parent=46 // loop_pre_header
                  _
                $region49: #{tpu_custom_call.1} parent=46 // loop_header
                  %s138 = sphi 0, %s142
                  %p139 = scmp.ge.s32.totalorder %s138, 1
                  %s143 = sphi %s114, %s114
                  %s144 = sphi %s112, %s112
                $region50: #{tpu_custom_call.1} parent=46 // loop_header_branch
                  %141 = sbr.rel (%p139) target = $region54
                $region51: #{tpu_custom_call.1} parent=46 // loop_body
                  %v145 = vld [vmem:[%s143] sm:$0xff]
                  %146 = vst [vmem:[%s144] sm:$0xff] %v145
                  %v147 = vld [vmem:[%s143 + $0x10] sm:$0xff]
                  %148 = vst [vmem:[%s144 + $0x8] sm:$0xff] %v147
                $region52: #{tpu_custom_call.1} parent=46 // loop_footer
                  %s142 = sadd.s32 1, %s138
                $region53: #{tpu_custom_call.1} parent=46 // loop_footer_branch
                  %137 = sbr.rel target = $region49
                $region54: #{tpu_custom_call.1} parent=46 // loop_exit
                  _
              $region47: #{tpu_custom_call.1} parent=31 // pred_fallthru
                _
              // Predicated region
              $region55: #{tpu_custom_call.1} parent=31 // pred_check
                _
              $region56: #{tpu_custom_call.1} parent=31 // pred_check_branch
                %150 = sbr.rel target = $region58
              $region57: #{tpu_custom_call.1} parent=31 // pred_region
                _
              $region58: #{tpu_custom_call.1} parent=31 // pred_fallthru
                _
            $region32: #{tpu_custom_call.1} parent=27 // pred_fallthru
              _
            // Predicated region
            $region33: #{tpu_custom_call.1} parent=27 // pred_check
              _
            $region34: #{tpu_custom_call.1} parent=27 // pred_check_branch
              %120 = sbr.rel target = $region36
            $region35: #{tpu_custom_call.1} parent=27 // pred_region
              %s122 = ssub.s32 256, 1
              loop: start=0, step=1, limit=1
              $region37: #{tpu_custom_call.1} parent=35 // loop_pre_header
                _
              $region38: #{tpu_custom_call.1} parent=35 // loop_header
                %s124 = sphi 0, %s128
                %p125 = scmp.ge.s32.totalorder %s124, 1
                %s129 = sphi %s114, %s114
                %s130 = sphi %s112, %s112
              $region39: #{tpu_custom_call.1} parent=35 // loop_header_branch
                %127 = sbr.rel (%p125) target = $region43
              $region40: #{tpu_custom_call.1} parent=35 // loop_body
                %v131 = vld [vmem:[%s129] sm:%s122]
                %132 = vst [vmem:[%s130] sm:%s122] %v131
                %v133 = vld [vmem:[%s129 + $0x10] sm:%s122]
                %134 = vst [vmem:[%s130 + $0x8] sm:%s122] %v133
              $region41: #{tpu_custom_call.1} parent=35 // loop_footer
                %s128 = sadd.s32 1, %s124
              $region42: #{tpu_custom_call.1} parent=35 // loop_footer_branch
                %123 = sbr.rel target = $region38
              $region43: #{tpu_custom_call.1} parent=35 // loop_exit
                _
            $region36: #{tpu_custom_call.1} parent=27 // pred_fallthru
              _
          $region28: #{tpu_custom_call.1} parent=23 // pred_fallthru
            _
          %151 = vnop
        $region24: #{tpu_custom_call.1} parent=19 // pred_fallthru
          _
      $region20: #{tpu_custom_call.1} parent=5 // pred_fallthru
        _
      %p152 = scmp.le.s32.totalorder 1, %s11
      %p153 = scmp.lt.s32.totalorder %s11, 3
      %p154 = pnand %p152, %p153
      %p155 = pneg %p154
      // Predicated region
      $region59: #{tpu_custom_call.1} parent=5 // pred_check
        _
      $region60: #{tpu_custom_call.1} parent=5 // pred_check_branch
        %157 = sbr.rel (%p154) target = $region62
      $region61: #{tpu_custom_call.1} parent=5 // pred_region
        %s158 = ssub.s32 %s11, 1
        %s159 = sand.u32 %s24, 1
        %s160 = sand.u32 %s24, 1
        %s161 = smul.addr %s160, 16
        %s162 = scalar_lea.vmem [#allocation2], %s161
        // Predicated region
        $region63: #{tpu_custom_call.1} parent=61 // pred_check
          %p163 = pneg %p37
        $region64: #{tpu_custom_call.1} parent=61 // pred_check_branch
          %165 = sbr.rel (%p163) target = $region66
        $region65: #{tpu_custom_call.1} parent=61 // pred_region
          _
        $region66: #{tpu_custom_call.1} parent=61 // pred_fallthru
          _
        %s166 = sand.u32 %s24, 1
        %s167 = sand.u32 %s24, 1
        %s168 = smul.addr %s167, 16
        %s169 = scalar_lea.vmem [#allocation2], %s168
        %p170 = pneg %p37
        %p171 = pneg %p34
        %p172 = pneg %p58
        %p173 = pneg %p55
        %p174 = pneg %p84
        %p175 = pneg %p81
        %s176 = sand.u32 %s71, 1
        %s177 = scalar_lea.sflag [#allocation4], %s176
        %s178 = sand.u32 %s71, 1
        %s179 = smul.addr %s178, 2
        %s180 = scalar_lea.vmem [#allocation3], %s179
        %v181 = vld [vmem:[%s162] sm:$0xff]
        %v182 = vld [vmem:[%s162 + $0x8] sm:$0x3]
        %v183 = vld [vmem:[%s1] sm:$0xff]
        %v184 = vld [vmem:[%s1 + $0x8] sm:$0x1f]
        %v185 = vld [vmem:[%s1 + $0x10] sm:$0xff]
        %v186 = vld [vmem:[%s1 + $0x18] sm:$0x3]
        %vm187 = vcmask 80896
        %v189 = vsel %vm187, %v183, 0
        %v192 = vsel %vm187, %v184, 0
        %vm194 = vcmask 1041408
        %v196 = vsel %vm194, %v182, 0
        %198 = vmatprep.subr.mxu0 0.0
        %199 = vmatpush1.msra.mxu0 0.0
        %200 = vmatprep.subr.mxu0 0.0
        %201 = vmatpush1.msra.mxu0 0.0
        %202 = vmatprep.subr.mxu0 0.0
        %203 = vmatpush1.msra.mxu0 0.0
        %204 = vmatprep.subr.mxu0 0.0
        %205 = vmatpush1.msra.mxu0 0.0
        %206 = vmatprep.subr.mxu0 0.0
        %207 = vmatpush1.msra.mxu0 0.0
        %208 = vmatprep.subr.mxu0 0.0
        %209 = vmatpush1.msra.mxu0 0.0
        %210 = vmatprep.subr.mxu0 0.0
        %211 = vmatpush1.msra.mxu0 0.0
        %212 = vmatprep.subr.mxu0 0.0
        %213 = vmatpush1.msra.mxu0 0.0
        %214 = vmatprep.subr.mxu0 0.0
        %215 = vmatpush1.msra.mxu0 0.0
        %216 = vmatprep.subr.mxu0 0.0
        %217 = vmatpush1.msra.mxu0 0.0
        %218 = vmatprep.subr.mxu0 0.0
        %219 = vmatpush1.msra.mxu0 0.0
        %220 = vmatprep.subr.mxu0 0.0
        %221 = vmatpush1.msra.mxu0 0.0
        %222 = vmatprep.subr.mxu0 0.0
        %223 = vmatpush1.msra.mxu0 0.0
        %224 = vmatprep.subr.mxu0 0.0
        %225 = vmatpush1.msra.mxu0 0.0
        %226 = vmatprep.subr.mxu0 0.0
        %227 = vmatpush1.msra.mxu0 %v196
        %228 = vmatprep.subr.mxu0 0.0
        %229 = vmatpush1.msra.mxu0 %v181
        %230 = vmatprep.subr.mxu0 0.0
        %231 = vmatpush2.msra.mxu0 0.0
        %232 = vmatprep.subr.mxu0 0.0
        %233 = vmatpush2.msra.mxu0 0.0
        %234 = vmatprep.subr.mxu0 0.0
        %235 = vmatpush2.msra.mxu0 0.0
        %236 = vmatprep.subr.mxu0 0.0
        %237 = vmatpush2.msra.mxu0 0.0
        %238 = vmatprep.subr.mxu0 0.0
        %239 = vmatpush2.msra.mxu0 0.0
        %240 = vmatprep.subr.mxu0 0.0
        %241 = vmatpush2.msra.mxu0 0.0
        %242 = vmatprep.subr.mxu0 0.0
        %243 = vmatpush2.msra.mxu0 0.0
        %244 = vmatprep.subr.mxu0 0.0
        %245 = vmatpush2.msra.mxu0 0.0
        %246 = vmatprep.subr.mxu0 0.0
        %247 = vmatpush2.msra.mxu0 0.0
        %248 = vmatprep.subr.mxu0 0.0
        %249 = vmatpush2.msra.mxu0 0.0
        %250 = vmatprep.subr.mxu0 0.0
        %251 = vmatpush2.msra.mxu0 0.0
        %252 = vmatprep.subr.mxu0 0.0
        %253 = vmatpush2.msra.mxu0 0.0
        %254 = vmatprep.subr.mxu0 0.0
        %255 = vmatpush2.msra.mxu0 0.0
        %256 = vmatprep.subr.mxu0 0.0
        %257 = vmatpush2.msra.mxu0 0.0
        %258 = vmatprep.subr.mxu0 0.0
        %259 = vmatpush2.msra.mxu0 0.0
        %260 = vmatprep.subr.mxu0 0.0
        %261 = vmatpush2.msra.mxu0 0.0
        %262 = vmatprep.mubr.f32.mxu0 0.0
        %263 = vmatmul.mubr.f32.gmra.mxu0 %v189
        %v264 = vpop.f32.mrf.mxu0
        %v265 = vadd.f32 0.0, %v264
        %v266 = vpop.f32.mrf.mxu0
        %267 = vmatprep.mubr.f32.mxu0 0.0
        %268 = vmatmul.mubr.f32.gmra.mxu0 %v192
        %v269 = vpop.f32.mrf.mxu0
        %v270 = vadd.f32 0.0, %v269
        %v271 = vpop.f32.mrf.mxu0
        %272 = vdwg.mxu0
        %v273 = vmax.f32 %v265, 0.0
        %v274 = vmax.f32 %v270, 0.0
        %vm275 = vcmask 105472
        %v277 = vsel %vm275, %v185, 0
        %vm279 = vcmask 1044480
        %v281 = vsel %vm279, %v274, 0
        %283 = vmatprep.subr.mxu0 0.0
        %284 = vmatpush1.msra.mxu0 0.0
        %285 = vmatprep.subr.mxu0 0.0
        %286 = vmatpush1.msra.mxu0 0.0
        %287 = vmatprep.subr.mxu0 0.0
        %288 = vmatpush1.msra.mxu0 0.0
        %289 = vmatprep.subr.mxu0 0.0
        %290 = vmatpush1.msra.mxu0 0.0
        %291 = vmatprep.subr.mxu0 0.0
        %292 = vmatpush1.msra.mxu0 0.0
        %293 = vmatprep.subr.mxu0 0.0
        %294 = vmatpush1.msra.mxu0 0.0
        %295 = vmatprep.subr.mxu0 0.0
        %296 = vmatpush1.msra.mxu0 0.0
        %297 = vmatprep.subr.mxu0 0.0
        %298 = vmatpush1.msra.mxu0 0.0
        %299 = vmatprep.subr.mxu0 0.0
        %300 = vmatpush1.msra.mxu0 0.0
        %301 = vmatprep.subr.mxu0 0.0
        %302 = vmatpush1.msra.mxu0 0.0
        %303 = vmatprep.subr.mxu0 0.0
        %304 = vmatpush1.msra.mxu0 0.0
        %305 = vmatprep.subr.mxu0 0.0
        %306 = vmatpush1.msra.mxu0 0.0
        %307 = vmatprep.subr.mxu0 0.0
        %308 = vmatpush1.msra.mxu0 0.0
        %309 = vmatprep.subr.mxu0 0.0
        %310 = vmatpush1.msra.mxu0 0.0
        %311 = vmatprep.subr.mxu0 0.0
        %312 = vmatpush1.msra.mxu0 %v281
        %313 = vmatprep.subr.mxu0 0.0
        %314 = vmatpush1.msra.mxu0 %v273
        %315 = vmatprep.subr.mxu0 0.0
        %316 = vmatpush2.msra.mxu0 0.0
        %317 = vmatprep.subr.mxu0 0.0
        %318 = vmatpush2.msra.mxu0 0.0
        %319 = vmatprep.subr.mxu0 0.0
        %320 = vmatpush2.msra.mxu0 0.0
        %321 = vmatprep.subr.mxu0 0.0
        %322 = vmatpush2.msra.mxu0 0.0
        %323 = vmatprep.subr.mxu0 0.0
        %324 = vmatpush2.msra.mxu0 0.0
        %325 = vmatprep.subr.mxu0 0.0
        %326 = vmatpush2.msra.mxu0 0.0
        %327 = vmatprep.subr.mxu0 0.0
        %328 = vmatpush2.msra.mxu0 0.0
        %329 = vmatprep.subr.mxu0 0.0
        %330 = vmatpush2.msra.mxu0 0.0
        %331 = vmatprep.subr.mxu0 0.0
        %332 = vmatpush2.msra.mxu0 0.0
        %333 = vmatprep.subr.mxu0 0.0
        %334 = vmatpush2.msra.mxu0 0.0
        %335 = vmatprep.subr.mxu0 0.0
        %336 = vmatpush2.msra.mxu0 0.0
        %337 = vmatprep.subr.mxu0 0.0
        %338 = vmatpush2.msra.mxu0 0.0
        %339 = vmatprep.subr.mxu0 0.0
        %340 = vmatpush2.msra.mxu0 0.0
        %341 = vmatprep.subr.mxu0 0.0
        %342 = vmatpush2.msra.mxu0 0.0
        %343 = vmatprep.subr.mxu0 0.0
        %344 = vmatpush2.msra.mxu0 0.0
        %345 = vmatprep.subr.mxu0 0.0
        %346 = vmatpush2.msra.mxu0 0.0
        %347 = vmatprep.mubr.f32.mxu0 0.0
        %348 = vmatmul.mubr.f32.gmra.mxu0 %v277
        %v349 = vpop.f32.mrf.mxu0
        %v350 = vadd.f32 0.0, %v349
        %v351 = vpop.f32.mrf.mxu0
        %352 = vdwg.mxu0
        %v353 = vxor.u32 %v350, 2147483648
        %v354 = vmul.f32 %v353, 1.442695
        %v355 = vpow.pop %v354
        %v356 = vadd.f32 %v355, 1.0
        %v357 = vrcp.pop %v356
        %v358 = vmul.f32 1.0, %v357
        %360 = vset.pattern.permute.xlu0 8
        %361 = vperm.xlu0 %360, %v186
        %v362 = vpop.permute.xlu0 %361
        %vm364 = vcmask 64512
        %v365 = vsel %vm364, %v186, 0
        %367 = vmatprep.subr.mxu0 0.0
        %368 = vmatpush1.msra.mxu0 0.0
        %369 = vmatprep.subr.mxu0 0.0
        %370 = vmatpush1.msra.mxu0 0.0
        %371 = vmatprep.subr.mxu0 0.0
        %372 = vmatpush1.msra.mxu0 0.0
        %373 = vmatprep.subr.mxu0 0.0
        %374 = vmatpush1.msra.mxu0 0.0
        %375 = vmatprep.subr.mxu0 0.0
        %376 = vmatpush1.msra.mxu0 0.0
        %377 = vmatprep.subr.mxu0 0.0
        %378 = vmatpush1.msra.mxu0 0.0
        %379 = vmatprep.subr.mxu0 0.0
        %380 = vmatpush1.msra.mxu0 0.0
        %381 = vmatprep.subr.mxu0 0.0
        %382 = vmatpush1.msra.mxu0 0.0
        %383 = vmatprep.subr.mxu0 0.0
        %384 = vmatpush1.msra.mxu0 0.0
        %385 = vmatprep.subr.mxu0 0.0
        %386 = vmatpush1.msra.mxu0 0.0
        %387 = vmatprep.subr.mxu0 0.0
        %388 = vmatpush1.msra.mxu0 0.0
        %389 = vmatprep.subr.mxu0 0.0
        %390 = vmatpush1.msra.mxu0 0.0
        %391 = vmatprep.subr.mxu0 0.0
        %392 = vmatpush1.msra.mxu0 0.0
        %393 = vmatprep.subr.mxu0 0.0
        %394 = vmatpush1.msra.mxu0 0.0
        %395 = vmatprep.subr.mxu0 0.0
        %396 = vmatpush1.msra.mxu0 0.0
        %397 = vmatprep.subr.mxu0 0.0
        %398 = vmatpush1.msra.mxu0 %v358
        %399 = vmatprep.subr.mxu0 0.0
        %400 = vmatpush2.msra.mxu0 0.0
        %401 = vmatprep.subr.mxu0 0.0
        %402 = vmatpush2.msra.mxu0 0.0
        %403 = vmatprep.subr.mxu0 0.0
        %404 = vmatpush2.msra.mxu0 0.0
        %405 = vmatprep.subr.mxu0 0.0
        %406 = vmatpush2.msra.mxu0 0.0
        %407 = vmatprep.subr.mxu0 0.0
        %408 = vmatpush2.msra.mxu0 0.0
        %409 = vmatprep.subr.mxu0 0.0
        %410 = vmatpush2.msra.mxu0 0.0
        %411 = vmatprep.subr.mxu0 0.0
        %412 = vmatpush2.msra.mxu0 0.0
        %413 = vmatprep.subr.mxu0 0.0
        %414 = vmatpush2.msra.mxu0 0.0
        %415 = vmatprep.subr.mxu0 0.0
        %416 = vmatpush2.msra.mxu0 0.0
        %417 = vmatprep.subr.mxu0 0.0
        %418 = vmatpush2.msra.mxu0 0.0
        %419 = vmatprep.subr.mxu0 0.0
        %420 = vmatpush2.msra.mxu0 0.0
        %421 = vmatprep.subr.mxu0 0.0
        %422 = vmatpush2.msra.mxu0 0.0
        %423 = vmatprep.subr.mxu0 0.0
        %424 = vmatpush2.msra.mxu0 0.0
        %425 = vmatprep.subr.mxu0 0.0
        %426 = vmatpush2.msra.mxu0 0.0
        %427 = vmatprep.subr.mxu0 0.0
        %428 = vmatpush2.msra.mxu0 0.0
        %429 = vmatprep.subr.mxu0 0.0
        %430 = vmatpush2.msra.mxu0 0.0
        %431 = vmatprep.mubr.f32.mxu0 0.0
        %432 = vmatmul.mubr.f32.gmra.mxu0 %v365
        %v433 = vpop.f32.mrf.mxu0
        %v434 = vadd.f32 %v362, %v433
        %v435 = vpop.f32.mrf.mxu0
        %436 = vdwg.mxu0
        %437 = vst [vmem:[%s180] sm:$0x3] %v434
        %s438 = sand.u32 %s71, 1
        %s439 = scalar_lea.sflag [#allocation4], %s438
        %s440 = sand.u32 %s71, 1
        %s441 = smul.addr %s440, 2
        %s442 = scalar_lea.vmem [#allocation3], %s441
        // Predicated region
        $region67: #{tpu_custom_call.1} parent=61 // pred_check
          %p443 = pneg %p81
        $region68: #{tpu_custom_call.1} parent=61 // pred_check_branch
          %445 = sbr.rel (%p443) target = $region70
        $region69: #{tpu_custom_call.1} parent=61 // pred_region
          %s447 = ssub.s32 32, 32
          %448 = vsyncadd %s439, %s447
          %s449 = smul.addr %s16, 32
          %s450 = scalar_lea.hbm %s2, %s449
          %s452 = sshll.u32 %s442, 4
          %s453 = int_to_ptr.vmem [resolvable:$true] %s452
          %455 = dma.vmem_to_hbm [thread:$0]  %s453, 32, %s450, %s439
        $region70: #{tpu_custom_call.1} parent=61 // pred_fallthru
          _
      $region62: #{tpu_custom_call.1} parent=5 // pred_fallthru
        _
      %p456 = scmp.le.s32.totalorder 2, %s11
      // Predicated region
      $region71: #{tpu_custom_call.1} parent=5 // pred_check
        %p457 = pneg %p456
      $region72: #{tpu_custom_call.1} parent=5 // pred_check_branch
        %459 = sbr.rel (%p457) target = $region74
      $region73: #{tpu_custom_call.1} parent=5 // pred_region
        %s460 = ssub.s32 %s11, 2
        // Predicated region
        $region75: #{tpu_custom_call.1} parent=73 // pred_check
          %p461 = pneg %p87
        $region76: #{tpu_custom_call.1} parent=73 // pred_check_branch
          %463 = sbr.rel (%p461) target = $region78
        $region77: #{tpu_custom_call.1} parent=73 // pred_region
          %s464 = sand.u32 %s72, 1
          %s465 = scalar_lea.sflag [#allocation4], %s464
          %s466 = sand.u32 %s72, 1
          %s467 = smul.addr %s466, 2
          %s468 = scalar_lea.vmem [#allocation3], %s467
          %469 = dma.done %s465, 32
        $region78: #{tpu_custom_call.1} parent=73 // pred_fallthru
          _
      $region74: #{tpu_custom_call.1} parent=5 // pred_fallthru
        _
    $region6: #{tpu_custom_call.1} parent=1 // loop_footer
      %s15 = sadd.s32 1, %s11
    $region7: #{tpu_custom_call.1} parent=1 // loop_footer_branch
      %10 = sbr.rel target = $region3
    $region8: #{tpu_custom_call.1} parent=1 // loop_exit
      _
    %470 = vsyncpa [#allocation4], 1
    %s471 = scalar_lea.sflag [#allocation4], 1
    %472 = vsyncpa %s471, 1

</llo_original>
